<compile_context>
chip_gen: v7x
topology: tpu7x:2x2x1
jax: 0.10.0
libtpu: 0.0.40
codegen_flags: <defaults>
</compile_context>

<pallas_src>
import jax
import jax.numpy as jnp
from jax.experimental import pallas as pl
from jax.experimental.pallas import tpu as pltpu


def _make_attention_kernel(n_valid):
    """Builds the kernel; n_valid (static) masks padded items when N % 8 != 0."""

    def attention_kernel(x_ref, w1_ref, b1_ref, w2_ref, o_ref):
        # x_ref:  (Bblk, Np, D)   current block of batch elements
        # w1_ref: (D, Hp)  b1_ref: (1, Hp)   (Hp = hidden padded to 128 lanes)
        # w2_ref: (1, Hp)  (w2^T, zero-padded)
        # o_ref:  (Bblk, Np)      lane-dense softmax weights
        blk_b, n, d = x_ref.shape
        hp = w1_ref.shape[1]

        # Linear(dim, H) + ReLU on the MXU; tall M = Bblk*Np, f32 accumulate.
        # n is a multiple of 8, so this reshape is layout-preserving.
        x2d = x_ref[...].reshape(blk_b * n, d)
        h = jnp.dot(x2d, w1_ref[...], preferred_element_type=jnp.float32)
        h = jnp.maximum(h + b1_ref[...], 0.0)                        # (Bblk*Np, Hp)

        # Linear(H, 1) as VPU multiply + lane (XLU) reduce -> lane-major scores.
        # b2 is dropped: softmax is shift-invariant.
        hw = h.reshape(blk_b, n, hp) * w2_ref[...]                   # (Bblk, Np, Hp)
        s = jnp.sum(hw, axis=-1)                                     # (Bblk, Np)

        if n != n_valid:  # static: mask padded items so they get exactly 0 weight
            col = jax.lax.broadcasted_iota(jnp.int32, (blk_b, n), 1)
            s = jnp.where(col < n_valid, s, -jnp.inf)

        # Softmax over N (lane axis): lane reductions + EUP exp/reciprocal.
        m = jnp.max(s, axis=-1, keepdims=True)                       # (Bblk, 1)
        e = jnp.exp(s - m)                                           # (Bblk, Np)
        denom = jnp.sum(e, axis=-1, keepdims=True)                   # (Bblk, 1)
        inv = pl.reciprocal(denom, approx=True)                      # EUP slot
        inv = inv * (2.0 - denom * inv)                              # Newton -> ~f32 exact
        o_ref[...] = (e * inv).astype(o_ref.dtype)

    return attention_kernel


def attention_forward(x, w1, b1, w2, b2=None, block_b=None, matmul_dtype=None):
    """x: (B, N, D); w1: (D, H); b1: (H,); w2: (H, 1); b2: (1,) (unused: softmax
    is shift-invariant). Returns softmax attention weights of shape (B, N, 1).

    matmul_dtype=jnp.bfloat16 casts x/w1 for the MXU matmul (softmax stays f32).
    """
    del b2  # softmax shift-invariance: adding a scalar to every score is a no-op
    B, N, D = x.shape
    H = w1.shape[1]
    LANES, SUB = 128, 8
    MiB = 1024 * 1024
    f32 = jnp.float32

    in_dt = jnp.bfloat16 if matmul_dtype == jnp.bfloat16 else x.dtype
    out_dt = x.dtype

    # --- pad hidden dim to full lanes (exact: ReLU(0)=0, zero w2 rows) -------
    Hp = ((H + LANES - 1) // LANES) * LANES
    w1p = jnp.zeros((D, Hp), in_dt).at[:, :H].set(w1.astype(in_dt))
    b1p = jnp.zeros((1, Hp), f32).at[:, :H].set(b1.reshape(1, H).astype(f32))
    w2p = jnp.zeros((1, Hp), f32).at[:, :H].set(w2.reshape(1, H).astype(f32))

    # --- pad N (items) to a sublane multiple so in-kernel reshapes are views;
    #     padded items are masked to -inf in the kernel (exact) ---------------
    Np = ((N + SUB - 1) // SUB) * SUB
    xk = x.astype(in_dt)
    if Np != N:  # rare; costs one extra pass over x only in this case
        xk = jnp.pad(xk, ((0, 0), (0, Np - N), (0, 0)))

    x_isz = jnp.dtype(in_dt).itemsize
    o_isz = jnp.dtype(out_dt).itemsize

    def est_vmem_bytes(bb):
        # double-buffered x/out tiles + resident weights + f32 intermediates
        x_tile = bb * Np * D * x_isz
        out_tile = bb * Np * o_isz
        weights = D * Hp * x_isz + 2 * Hp * 4
        interm = 2 * bb * Np * Hp * 4            # h and hw/e-class f32 temps
        return 2 * (x_tile + out_tile) + 2 * weights + interm

    # --- generation-aware VMEM budget ----------------------------------------
    try:
        vmem_cap = int(pltpu.get_tpu_info().vmem_capacity_bytes)
    except Exception:
        vmem_cap = 64 * MiB                      # conservative: v7x per-TC VMEM
    budget = int(0.4 * vmem_cap)                 # leave headroom for compiler scratch

    # --- choose batch block: byte-target the x tile (~2 MiB), respect the
    #     total VMEM budget, keep the output sublane dim a multiple of 8 ------
    if block_b is None:
        target_x_tile = 2 * MiB
        per_elem = Np * D * x_isz
        bb = max(1, target_x_tile // per_elem)
        bb = max(SUB, (bb // SUB) * SUB)
        while bb > SUB and est_vmem_bytes(bb) > budget:
            bb -= SUB
        if bb >= B:
            bb = B                               # one block covering the whole batch
        # give multi-TensorCore chips (v7x) >= 2 grid steps to shard over
        if bb == B and B >= 2 * SUB:
            bb = (((B + 1) // 2 + SUB - 1) // SUB) * SUB
        block_b = bb

    num_blocks = pl.cdiv(B, block_b)             # partial last block: rows >= B are
                                                 # per-row garbage, never written

    vmem_needed = est_vmem_bytes(block_b)
    vmem_limit = int(min(0.9 * vmem_cap, max(32 * MiB, int(1.5 * vmem_needed))))

    kernel = _make_attention_kernel(N)

    out = pl.pallas_call(
        kernel,
        out_shape=jax.ShapeDtypeStruct((B, Np), out_dt),
        grid_spec=pltpu.PrefetchScalarGridSpec(
            num_scalar_prefetch=0,
            grid=(num_blocks,),
            in_specs=[
                pl.BlockSpec((block_b, Np, D), lambda b: (b, 0, 0)),
                pl.BlockSpec((D, Hp), lambda b: (0, 0)),   # grid-invariant
                pl.BlockSpec((1, Hp), lambda b: (0, 0)),
                pl.BlockSpec((1, Hp), lambda b: (0, 0)),
            ],
            out_specs=pl.BlockSpec((block_b, Np), lambda b: (b, 0)),
        ),
        compiler_params=pltpu.CompilerParams(
            dimension_semantics=("parallel",),
            vmem_limit_bytes=vmem_limit,
        ),
    )(xk, w1p, b1p, w2p)

    # lane-dense (B, Np) out of the kernel; restore PyTorch (B, N, 1) here.
    return out[:, :N].reshape(B, N, 1)


def attention_reference(x, w1, b1, w2, b2):
    h = jnp.maximum(jnp.einsum("bnd,dh->bnh", x, w1) + b1, 0.0)
    s = jnp.einsum("bnh,ho->bno", h, w2) + b2
    return jax.nn.softmax(s, axis=1)


if __name__ == "__main__":
    B, N, D, H = 2, 8, 32, 100

    key = jax.random.PRNGKey(0)
    kx, kw1, kb1, kw2, kb2 = jax.random.split(key, 5)

    x = jax.random.normal(kx, (B, N, D), dtype=jnp.float32)

    # PyTorch-style uniform(-1/sqrt(fan_in), 1/sqrt(fan_in)) init
    lim1 = 1.0 / (D ** 0.5)
    w1 = jax.random.uniform(kw1, (D, H), jnp.float32, -lim1, lim1)
    b1 = jax.random.uniform(kb1, (H,), jnp.float32, -lim1, lim1)
    lim2 = 1.0 / (H ** 0.5)
    w2 = jax.random.uniform(kw2, (H, 1), jnp.float32, -lim2, lim2)
    b2 = jax.random.uniform(kb2, (1,), jnp.float32, -lim2, lim2)

    out = attention_forward(x, w1, b1, w2, b2)
    out = jax.block_until_ready(out)

    ref = attention_reference(x, w1, b1, w2, b2)
    assert out.shape == (B, N, 1)
    assert jnp.allclose(out, ref, atol=1e-5, rtol=1e-5), "mismatch vs reference"

    print("KERNEL_OK")
</pallas_src>

<mosaic_0001>
module attributes {stable_mosaic.version = 11 : i64} {
  func.func @attention_kernel(%arg0: i32, %arg1: memref<2x8x32xf32, #tpu.memory_space<vmem>>, %arg2: memref<32x128xf32, #tpu.memory_space<vmem>>, %arg3: memref<1x128xf32, #tpu.memory_space<vmem>>, %arg4: memref<1x128xf32, #tpu.memory_space<vmem>>, %arg5: memref<2x8xf32, #tpu.memory_space<vmem>>) attributes {dimension_semantics = [#tpu.dimension_semantics<parallel>], iteration_bounds = array<i64: 1>, scalar_prefetch = 0 : i64, scratch_operands = 0 : i64, tpu.core_type = #tpu.core_type<tc>, window_params = [{transform_indices = @transform_0, window_bounds = array<i64: 2, 8, 32>}, {pipeline_mode = #tpu.pipeline_mode<synchronous>, transform_indices = @transform_1, window_bounds = array<i64: 32, 128>}, {pipeline_mode = #tpu.pipeline_mode<synchronous>, transform_indices = @transform_2, window_bounds = array<i64: 1, 128>}, {pipeline_mode = #tpu.pipeline_mode<synchronous>, transform_indices = @transform_3, window_bounds = array<i64: 1, 128>}, {transform_indices = @transform_4, window_bounds = array<i64: 2, 8>}]} {
    %c0 = arith.constant 0 : index
    %c0_0 = arith.constant 0 : index
    %c0_1 = arith.constant 0 : index
    %0 = vector.load %arg1[%c0, %c0_0, %c0_1] : memref<2x8x32xf32, #tpu.memory_space<vmem>>, vector<2x8x32xf32>
    %1 = vector.shape_cast %0 : vector<2x8x32xf32> to vector<16x32xf32>
    %c0_2 = arith.constant 0 : index
    %c0_3 = arith.constant 0 : index
    %2 = vector.load %arg2[%c0_2, %c0_3] : memref<32x128xf32, #tpu.memory_space<vmem>>, vector<32x128xf32>
    %cst = arith.constant dense<0.000000e+00> : vector<16x128xf32>
    %3 = tpu.matmul %1, %2, %cst {dimension_numbers = #tpu.dot_dimension_numbers<[1], [0], [0], [1], [0, 0, 1, 1], [], []>} : vector<16x32xf32>, vector<32x128xf32>, vector<16x128xf32> -> vector<16x128xf32>
    %c0_4 = arith.constant 0 : index
    %c0_5 = arith.constant 0 : index
    %4 = vector.load %arg3[%c0_4, %c0_5] : memref<1x128xf32, #tpu.memory_space<vmem>>, vector<1x128xf32>
    %5 = vector.broadcast %4 : vector<1x128xf32> to vector<16x128xf32>
    %6 = arith.addf %3, %5 : vector<16x128xf32>
    %cst_6 = arith.constant 0.000000e+00 : f32
    %7 = vector.broadcast %cst_6 : f32 to vector<16x128xf32>
    %8 = arith.maximumf %6, %7 : vector<16x128xf32>
    %9 = vector.shape_cast %8 : vector<16x128xf32> to vector<2x8x128xf32>
    %c0_7 = arith.constant 0 : index
    %c0_8 = arith.constant 0 : index
    %10 = vector.load %arg4[%c0_7, %c0_8] : memref<1x128xf32, #tpu.memory_space<vmem>>, vector<1x128xf32>
    %11 = vector.shape_cast %10 : vector<1x128xf32> to vector<1x1x128xf32>
    %12 = vector.broadcast %11 : vector<1x1x128xf32> to vector<2x8x128xf32>
    %13 = arith.mulf %9, %12 : vector<2x8x128xf32>
    %cst_9 = arith.constant dense<0.000000e+00> : vector<2x8xf32>
    %14 = vector.multi_reduction <add>, %13, %cst_9 [2] : vector<2x8x128xf32> to vector<2x8xf32>
    %cst_10 = arith.constant dense<0xFF800000> : vector<2xf32>
    %15 = vector.multi_reduction <maximumf>, %14, %cst_10 [1] : vector<2x8xf32> to vector<2xf32>
    %16 = vector.shape_cast %15 : vector<2xf32> to vector<2x1xf32>
    %17 = vector.broadcast %16 : vector<2x1xf32> to vector<2x8xf32>
    %18 = arith.subf %14, %17 : vector<2x8xf32>
    %19 = math.exp %18 : vector<2x8xf32>
    %cst_11 = arith.constant dense<0.000000e+00> : vector<2xf32>
    %20 = vector.multi_reduction <add>, %19, %cst_11 [1] : vector<2x8xf32> to vector<2xf32>
    %21 = vector.shape_cast %20 : vector<2xf32> to vector<2x1xf32>
    %22 = tpu.reciprocal %21 {approx = true} : vector<2x1xf32> -> vector<2x1xf32>
    %23 = arith.mulf %21, %22 : vector<2x1xf32>
    %cst_12 = arith.constant 2.000000e+00 : f32
    %24 = vector.broadcast %cst_12 : f32 to vector<2x1xf32>
    %25 = arith.subf %24, %23 : vector<2x1xf32>
    %26 = arith.mulf %22, %25 : vector<2x1xf32>
    %27 = vector.broadcast %26 : vector<2x1xf32> to vector<2x8xf32>
    %28 = arith.mulf %19, %27 : vector<2x8xf32>
    %c0_13 = arith.constant 0 : index
    %c0_14 = arith.constant 0 : index
    %29 = vector.load %arg5[%c0_13, %c0_14] : memref<2x8xf32, #tpu.memory_space<vmem>>, vector<2x8xf32>
    tpu.vector_store %arg5[%c0_13, %c0_14], %28 {strides = array<i32>} : memref<2x8xf32, #tpu.memory_space<vmem>>, vector<2x8xf32>,
    return
  }
  func.func @transform_0(%arg0: i32) -> (i32, i32, i32) {
    %c0_i32 = arith.constant 0 : i32
    %c0_i32_0 = arith.constant 0 : i32
    %c0_i32_1 = arith.constant 0 : i32
    return %arg0, %c0_i32, %c0_i32_0 : i32, i32, i32
  }
  func.func @transform_1(%arg0: i32) -> (i32, i32) {
    %c0_i32 = arith.constant 0 : i32
    %c0_i32_0 = arith.constant 0 : i32
    %c0_i32_1 = arith.constant 0 : i32
    return %c0_i32, %c0_i32_0 : i32, i32
  }
  func.func @transform_2(%arg0: i32) -> (i32, i32) {
    %c0_i32 = arith.constant 0 : i32
    %c0_i32_0 = arith.constant 0 : i32
    %c0_i32_1 = arith.constant 0 : i32
    return %c0_i32, %c0_i32_0 : i32, i32
  }
  func.func @transform_3(%arg0: i32) -> (i32, i32) {
    %c0_i32 = arith.constant 0 : i32
    %c0_i32_0 = arith.constant 0 : i32
    %c0_i32_1 = arith.constant 0 : i32
    return %c0_i32, %c0_i32_0 : i32, i32
  }
  func.func @transform_4(%arg0: i32) -> (i32, i32) {
    %c0_i32 = arith.constant 0 : i32
    %c0_i32_0 = arith.constant 0 : i32
    return %arg0, %c0_i32 : i32, i32
  }
}

</mosaic_0001>

<llo_original>
// kernel: tpu_custom_call.1
$region0: #{tpu_custom_call.1}
  #allocation0 [shape = 'u32[]', space=smem, size = 0x4, offset = 0x4, fixed_abs, tag = 'smem constant byte address 0x4 - core index']
  #allocation1 [shape = 'u32[144,128]{1,0:T(1,128)}', space=vmem, size = 0x12000, scoped, tag = 'internal scratch']
  %s0 = inlined_call_operand.hbm [shape: f32[2,8,32], index: 0, kind: input, shape index: {}]
  %s1 = inlined_call_operand.hbm [shape: f32[32,128], index: 1, kind: input, shape index: {}]
  %s2 = inlined_call_operand.vmem [shape: f32[1,128], index: 2, kind: input, shape index: {}]
  %s3 = inlined_call_operand.vmem [shape: f32[1,128], index: 3, kind: input, shape index: {}]
  %s4 = inlined_call_operand.hbm [shape: f32[2,8], index: 4, kind: output, shape index: {}]
  %s5 = sld [smem:[#allocation0]]
  $region34: #{tpu_custom_call.1} parent=0
    _
  %s7 = ssub.s32 1, %s5
  %s8 = scalar_select 0, %s7, %s5
  $region1: #{tpu_custom_call.1} parent=0
    #allocation2 [shape = 'u8[8192]{0}', space=vmem, size = 0x2000, scoped, tag = 'input window, operand 0, single buffered']
    #allocation3 [shape = 's32[1]{0}', space=sflag, size = 0x4, scoped, tag = 'scoped memory for tpu_custom_call.1']
    #allocation4 [shape = 's32[1]{0}', space=sflag, size = 0x4, scoped, tag = 'scoped memory for tpu_custom_call.1']
    #allocation5 [shape = 'u8[16384]{0}', space=vmem, size = 0x4000, scoped, tag = 'input window, operand 1, single buffered']
    #allocation6 [shape = 's32[1]{0}', space=sflag, size = 0x4, scoped, tag = 'scoped memory for tpu_custom_call.1']
    #allocation7 [shape = 'u8[1024]{0}', space=vmem, size = 0x400, scoped, tag = 'output window, operand 0, single buffered']
    %9 = vsyncpa [#allocation3], 0
    %10 = vsyncpa [#allocation6], 0
    %11 = vsyncpa [#allocation4], 0
    // Predicated region
    $region2: #{tpu_custom_call.1} parent=1 // pred_check
      _
    $region3: #{tpu_custom_call.1} parent=1 // pred_check_branch
      %13 = sbr.rel (0) target = $region5
    $region4: #{tpu_custom_call.1} parent=1 // pred_region
      %s15 = ssub.s32 256, 256
      %16 = vsyncadd [#allocation3], %s15
      %s17 = sshll.u32 [#allocation2], 4
      %s18 = int_to_ptr.vmem [resolvable:$true] %s17
      %23 = dma.hbm_to_vmem [thread:$0]  %s0, 256, %s18, [#allocation3], 128, 128, 8
    $region5: #{tpu_custom_call.1} parent=1 // pred_fallthru
      _
    // Predicated region
    $region6: #{tpu_custom_call.1} parent=1 // pred_check
      _
    $region7: #{tpu_custom_call.1} parent=1 // pred_check_branch
      %25 = sbr.rel (0) target = $region9
    $region8: #{tpu_custom_call.1} parent=1 // pred_region
      %s27 = ssub.s32 512, 512
      %28 = vsyncadd [#allocation6], %s27
      %s29 = sshll.u32 [#allocation5], 4
      %s30 = int_to_ptr.vmem [resolvable:$true] %s29
      %35 = dma.hbm_to_vmem [thread:$0]  %s1, 512, %s30, [#allocation6], 128, 128, 8
    $region9: #{tpu_custom_call.1} parent=1 // pred_fallthru
      _
    // Predicated region
    $region10: #{tpu_custom_call.1} parent=1 // pred_check
      _
    $region11: #{tpu_custom_call.1} parent=1 // pred_check_branch
      %37 = sbr.rel (0) target = $region13
    $region12: #{tpu_custom_call.1} parent=1 // pred_region
      _
    $region13: #{tpu_custom_call.1} parent=1 // pred_fallthru
      _
    // Predicated region
    $region14: #{tpu_custom_call.1} parent=1 // pred_check
      _
    $region15: #{tpu_custom_call.1} parent=1 // pred_check_branch
      %39 = sbr.rel (0) target = $region17
    $region16: #{tpu_custom_call.1} parent=1 // pred_region
      _
    $region17: #{tpu_custom_call.1} parent=1 // pred_fallthru
      _
    // Predicated region
    $region18: #{tpu_custom_call.1} parent=1 // pred_check
      _
    $region19: #{tpu_custom_call.1} parent=1 // pred_check_branch
      %41 = sbr.rel (0) target = $region21
    $region20: #{tpu_custom_call.1} parent=1 // pred_region
      %42 = dma.done [#allocation3], 256
    $region21: #{tpu_custom_call.1} parent=1 // pred_fallthru
      _
    // Predicated region
    $region22: #{tpu_custom_call.1} parent=1 // pred_check
      _
    $region23: #{tpu_custom_call.1} parent=1 // pred_check_branch
      %44 = sbr.rel (0) target = $region25
    $region24: #{tpu_custom_call.1} parent=1 // pred_region
      %45 = dma.done [#allocation6], 512
    $region25: #{tpu_custom_call.1} parent=1 // pred_fallthru
      _
    %v46 = vld [vmem:[#allocation2] sm:$0xff]
    %v47 = vld [vmem:[#allocation2 + $0x8] sm:$0xff]
    %v48 = vld [vmem:[#allocation5] sm:$0xff]
    %v49 = vld [vmem:[#allocation5 + $0x8] sm:$0xff]
    %v50 = vld [vmem:[#allocation5 + $0x10] sm:$0xff]
    %v51 = vld [vmem:[#allocation5 + $0x18] sm:$0xff]
    %v52 = vld [vmem:[%s2] sm:$0x1]
    %v54 = vlaneseq
    %v55 = vshrl.u32 %v54, 7
    %v56 = vsub.s32 0, %v55
    %v57 = vrot.slane %v52, %v56
    %vm59 = vcmask 261120
    %v61 = vsel %vm59, %v46, 0
    %v64 = vsel %vm59, %v47, 0
    %66 = vmatprep.subr.mxu0 0.0
    %67 = vmatpush1.msra.mxu0 %v48
    %68 = vmatprep.subr.mxu0 0.0
    %69 = vmatpush1.msra.mxu0 %v49
    %70 = vmatprep.subr.mxu0 0.0
    %71 = vmatpush1.msra.mxu0 %v50
    %72 = vmatprep.subr.mxu0 0.0
    %73 = vmatpush1.msra.mxu0 %v51
    %74 = vmatprep.subr.mxu0 0.0
    %75 = vmatpush1.msra.mxu0 0.0
    %76 = vmatprep.subr.mxu0 0.0
    %77 = vmatpush1.msra.mxu0 0.0
    %78 = vmatprep.subr.mxu0 0.0
    %79 = vmatpush1.msra.mxu0 0.0
    %80 = vmatprep.subr.mxu0 0.0
    %81 = vmatpush1.msra.mxu0 0.0
    %82 = vmatprep.subr.mxu0 0.0
    %83 = vmatpush1.msra.mxu0 0.0
    %84 = vmatprep.subr.mxu0 0.0
    %85 = vmatpush1.msra.mxu0 0.0
    %86 = vmatprep.subr.mxu0 0.0
    %87 = vmatpush1.msra.mxu0 0.0
    %88 = vmatprep.subr.mxu0 0.0
    %89 = vmatpush1.msra.mxu0 0.0
    %90 = vmatprep.subr.mxu0 0.0
    %91 = vmatpush1.msra.mxu0 0.0
    %92 = vmatprep.subr.mxu0 0.0
    %93 = vmatpush1.msra.mxu0 0.0
    %94 = vmatprep.subr.mxu0 0.0
    %95 = vmatpush1.msra.mxu0 0.0
    %96 = vmatprep.subr.mxu0 0.0
    %97 = vmatpush1.msra.mxu0 0.0
    %98 = vmatprep.subr.mxu0 0.0
    %99 = vmatpush1.msra.mxu0 0.0
    %100 = vmatprep.subr.mxu0 0.0
    %101 = vmatpush1.msra.mxu0 0.0
    %102 = vmatprep.subr.mxu0 0.0
    %103 = vmatpush1.msra.mxu0 0.0
    %104 = vmatprep.subr.mxu0 0.0
    %105 = vmatpush1.msra.mxu0 0.0
    %106 = vmatprep.subr.mxu0 0.0
    %107 = vmatpush1.msra.mxu0 0.0
    %108 = vmatprep.subr.mxu0 0.0
    %109 = vmatpush1.msra.mxu0 0.0
    %110 = vmatprep.subr.mxu0 0.0
    %111 = vmatpush1.msra.mxu0 0.0
    %112 = vmatprep.subr.mxu0 0.0
    %113 = vmatpush1.msra.mxu0 0.0
    %114 = vmatprep.subr.mxu0 0.0
    %115 = vmatpush1.msra.mxu0 0.0
    %116 = vmatprep.subr.mxu0 0.0
    %117 = vmatpush1.msra.mxu0 0.0
    %118 = vmatprep.subr.mxu0 0.0
    %119 = vmatpush1.msra.mxu0 0.0
    %120 = vmatprep.subr.mxu0 0.0
    %121 = vmatpush1.msra.mxu0 0.0
    %122 = vmatprep.subr.mxu0 0.0
    %123 = vmatpush1.msra.mxu0 0.0
    %124 = vmatprep.subr.mxu0 0.0
    %125 = vmatpush1.msra.mxu0 0.0
    %126 = vmatprep.subr.mxu0 0.0
    %127 = vmatpush1.msra.mxu0 0.0
    %128 = vmatprep.subr.mxu0 0.0
    %129 = vmatpush1.msra.mxu0 0.0
    %130 = vmatprep.mubr.f32.mxu0 0.0
    %131 = vmatmul.mubr.f32.gmra.mrb[0].mxu0 %v61
    %v132 = vpop.f32.mrb[0].mxu0
    %v133 = vadd.f32 %v57, %v132
    %v134 = vpop.f32.mrb[0].mxu0
    %135 = vmatprep.mubr.f32.mxu0 0.0
    %136 = vmatmul.mubr.f32.gmra.mrb[0].mxu0 %v64
    %v137 = vpop.f32.mrb[0].mxu0
    %v138 = vadd.f32 %v57, %v137
    %v139 = vpop.f32.mrb[0].mxu0
    %140 = vdwg.mxu0
    %v141 = vmax.f32 %v133, 0.0
    %v142 = vmax.f32 %v138, 0.0
    %v143 = vld [vmem:[%s3] sm:$0x1]
    %v145 = vlaneseq
    %v146 = vshrl.u32 %v145, 7
    %v147 = vsub.s32 0, %v146
    %v148 = vrot.slane %v143, %v147
    %v150 = vmul.f32 %v141, %v148
    %v151 = vmul.f32 %v142, %v148
    %152 = vadd.xlane.f32.xlu0 %v150
    %v153 = vpop.xlane.xlu0 %152
    %154 = vadd.xlane.f32.xlu0 %v151
    %v155 = vpop.xlane.xlu0 %154
    %v158 = vlaneseq
    %v159 = vand.u32 %v158, 127
    %v160 = vlaneseq
    %v161 = vshrl.u32 %v160, 7
    %v162 = vsub.s32 %v159, %v161
    %v163 = vrot.slane %v153, %v162
    %v164 = vlaneseq
    %v165 = vshrl.u32 %v164, 7
    %v166 = vsub.s32 %v159, %v165
    %v167 = vrot.slane %v155, %v166
    %vm168 = vcmask 1041409
    %v169 = vsel %vm168, %v167, %v163
    %vm171 = vcmask 58368
    %v172 = vsel %vm171, %v169, -inf
    %173 = vmax.xlane.f32.xlu0 %v172
    %v174 = vpop.xlane.xlu0 %173
    %v176 = vlaneseq
    %v177 = vshrl.u32 %v176, 7
    %v178 = vsub.s32 0, %v177
    %v179 = vrot.slane %v174, %v178
    %v180 = vlaneseq
    %v181 = vshrl.u32 %v180, 7
    %v182 = vsub.s32 1, %v181
    %v183 = vrot.slane %v174, %v182
    %v186 = vsub.f32 %v153, %v179
    %v187 = vsub.f32 %v155, %v183
    %v188 = vmul.f32 %v186, 1.442695
    %v189 = vpow.pop %v188
    %v190 = vmul.f32 %v187, 1.442695
    %v191 = vpow.pop %v190
    %194 = vset.pattern.permute.xlu0 0
    %195 = vperm.xlu0 %194, %v189
    %v196 = vpop.permute.xlu0 %195
    %197 = vset.pattern.permute.xlu0 0
    %198 = vperm.xlu0 %197, %v191
    %v199 = vpop.permute.xlu0 %198
    %v200 = vlaneseq
    %v201 = vshrl.u32 %v200, 7
    %v202 = vsub.s32 %v159, %v201
    %v203 = vrot.slane %v196, %v202
    %v204 = vlaneseq
    %v205 = vshrl.u32 %v204, 7
    %v206 = vsub.s32 %v159, %v205
    %v207 = vrot.slane %v199, %v206
    %v208 = vsel %vm168, %v207, %v203
    %v210 = vsel %vm171, %v208, 0.0
    %211 = vadd.xlane.f32.xlu0 %v210
    %v212 = vpop.xlane.xlu0 %211
    %v213 = vrcp.pop %v212
    %v214 = vmul.f32 %v212, %v213
    %v215 = vsub.f32 2.0, %v214
    %v216 = vmul.f32 %v213, %v215
    %v218 = vlaneseq
    %v219 = vshrl.u32 %v218, 7
    %v220 = vsub.s32 0, %v219
    %v221 = vrot.slane %v216, %v220
    %v222 = vlaneseq
    %v223 = vshrl.u32 %v222, 7
    %v224 = vsub.s32 1, %v223
    %v225 = vrot.slane %v216, %v224
    %v228 = vmul.f32 %v189, %v221
    %v229 = vmul.f32 %v191, %v225
    %232 = vset.pattern.permute.xlu0 0
    %233 = vperm.xlu0 %232, %v228
    %v234 = vpop.permute.xlu0 %233
    %235 = vset.pattern.permute.xlu0 0
    %236 = vperm.xlu0 %235, %v229
    %v237 = vpop.permute.xlu0 %236
    %v238 = vlaneseq
    %v239 = vshrl.u32 %v238, 7
    %v240 = vsub.s32 %v159, %v239
    %v241 = vrot.slane %v234, %v240
    %v242 = vlaneseq
    %v243 = vshrl.u32 %v242, 7
    %v244 = vsub.s32 %v159, %v243
    %v245 = vrot.slane %v237, %v244
    %v246 = vsel %vm168, %v245, %v241
    %248 = vst.msk [vmem:[#allocation7] sm:$0x3] %vm171, %v246
    // Predicated region
    $region26: #{tpu_custom_call.1} parent=1 // pred_check
      _
    $region27: #{tpu_custom_call.1} parent=1 // pred_check_branch
      %250 = sbr.rel (0) target = $region29
    $region28: #{tpu_custom_call.1} parent=1 // pred_region
      %s252 = ssub.s32 32, 32
      %253 = vsyncadd [#allocation4], %s252
      %s255 = sshll.u32 [#allocation7], 4
      %s256 = int_to_ptr.vmem [resolvable:$true] %s255
      %258 = dma.vmem_to_hbm [thread:$0]  %s256, 32, %s4, [#allocation4]
    $region29: #{tpu_custom_call.1} parent=1 // pred_fallthru
      _
    // Predicated region
    $region30: #{tpu_custom_call.1} parent=1 // pred_check
      _
    $region31: #{tpu_custom_call.1} parent=1 // pred_check_branch
      %260 = sbr.rel (0) target = $region33
    $region32: #{tpu_custom_call.1} parent=1 // pred_region
      %261 = dma.done [#allocation4], 32
    $region33: #{tpu_custom_call.1} parent=1 // pred_fallthru
      _
    %262 = vsyncpa [#allocation3], 1
    %263 = vsyncpa [#allocation6], 1
    %264 = vsyncpa [#allocation4], 1

</llo_original>
